<compile_context>
chip_gen: v7x
topology: tpu7x:2x2x1
jax: 0.10.0
libtpu: 0.0.40
codegen_flags: <defaults>
</compile_context>

<pallas_src>
import functools

import jax
import jax.numpy as jnp
from jax.experimental import pallas as pl
from jax.experimental.pallas import tpu as pltpu

_LANE = 128
# ~4 MiB blocks: amortize the ~0.35us per-grid-step overhead; double-buffered
# (in + out) that is ~16 MiB of VMEM, comfortably inside v7x's 64 MiB per TC
# and inside the 32 MiB scoped limit we request below (also raises v5e's 16 MiB
# default so compilation never has to shrink buffering).
_TARGET_TILE_BYTES = 4 << 20
_VMEM_LIMIT_BYTES = 32 << 20


def _sublane_multiple(dtype):
    """Dtype-aware sublane granularity: f32 -> 8, bf16 -> 16, int8/fp8 -> 32."""
    itemsize = jnp.dtype(dtype).itemsize
    return max(8, 8 * (4 // max(1, itemsize)))


def _neg_scale_kernel(g_ref, o_ref, *, neg_lam):
    # Backward hot path: dx = -lambda * g.
    # neg_lam is baked in as a compile-time f32 constant (no SMEM operand, and
    # lambda is not quantized to the gradient's dtype before the multiply).
    o_ref[...] = (g_ref[...].astype(jnp.float32) * neg_lam).astype(o_ref.dtype)


def _run_neg_scale_2d(g2, neg_lam):
    rows, cols = g2.shape
    itemsize = jnp.dtype(g2.dtype).itemsize
    sub = _sublane_multiple(g2.dtype)

    # Fixed large tile (shape-independent — no degenerate tiny-tile fallback).
    tile_rows = _TARGET_TILE_BYTES // max(1, cols * itemsize)
    if tile_rows >= rows:
        tile_rows = rows  # single full-extent block (always a legal block shape)
    else:
        # sublane-aligned; the ragged last block is handled by the cdiv grid.
        tile_rows = max(sub, (tile_rows // sub) * sub)

    grid = (pl.cdiv(rows, tile_rows),)
    kernel = functools.partial(_neg_scale_kernel, neg_lam=float(neg_lam))
    return pl.pallas_call(
        kernel,
        out_shape=jax.ShapeDtypeStruct((rows, cols), g2.dtype),
        grid=grid,
        in_specs=[pl.BlockSpec((tile_rows, cols), lambda i: (i, 0))],
        out_specs=pl.BlockSpec((tile_rows, cols), lambda i: (i, 0)),
        compiler_params=pltpu.CompilerParams(
            dimension_semantics=("parallel",),   # lets v7x shard the stream on 2 TCs
            vmem_limit_bytes=_VMEM_LIMIT_BYTES,
        ),
    )(g2)


def _neg_scale(g, neg_lam):
    """dx = neg_lam * g via Pallas, accepting g in its native shape (no pad)."""
    shape = g.shape
    n = g.size
    if n == 0:
        return g
    if n % _LANE == 0:
        g2 = g.reshape(-1, _LANE)          # copy-free lane-dense slab (common case)
    elif g.ndim >= 2:
        g2 = g.reshape(-1, shape[-1])      # ragged lane count: keep native trailing dim
    else:
        g2 = g.reshape(1, -1)
    return _run_neg_scale_2d(g2, neg_lam).reshape(shape)


@functools.partial(jax.custom_vjp, nondiff_argnums=(1,))
def gradient_reversal(x, lambda_=1.0):
    """Forward = identity (no copy needed in JAX: arrays are immutable)."""
    return x


def _grl_fwd(x, lambda_):
    # No residuals needed (avoid stashing shape/dtype objects — not JAX types).
    return x, None


def _grl_bwd(lambda_, _res, g):
    return (_neg_scale(g, -float(lambda_)),)


gradient_reversal.defvjp(_grl_fwd, _grl_bwd)


class GradientReversal:
    """JAX/Pallas analogue of the PyTorch GradientReversal module."""

    def __init__(self, lambda_=1.0):
        self.lambda_ = float(lambda_)

    def __call__(self, x):
        return gradient_reversal(x, self.lambda_)


if __name__ == "__main__":
    key = jax.random.PRNGKey(0)
    # layout: NCHW, matching the PyTorch convention.
    x = jax.random.normal(key, (2, 4, 16, 16), dtype=jnp.float32)

    grl = GradientReversal(lambda_=1.0)

    # Forward: identity (no kernel, no copy).
    y = grl(x)
    jax.block_until_ready(y)
    assert y.shape == x.shape and y.dtype == x.dtype
    assert jnp.allclose(y, x)

    # Backward: gradient reversed (scaled by -lambda) via the Pallas kernel.
    loss_fn = lambda z: jnp.sum(grl(z) * 2.0)
    dx = jax.grad(loss_fn)(x)
    jax.block_until_ready(dx)
    assert dx.shape == x.shape and dx.dtype == x.dtype
    assert jnp.allclose(dx, jnp.full_like(x, -2.0))

    # Ragged (non-multiple-of-128) shape + narrow dtype path, lambda != 1.
    grl2 = GradientReversal(lambda_=1.5)
    x2 = jax.random.normal(jax.random.PRNGKey(0), (3, 5, 7), dtype=jnp.bfloat16)
    dx2 = jax.grad(lambda z: jnp.sum(grl2(z).astype(jnp.float32) * 2.0))(x2)
    jax.block_until_ready(dx2)
    assert dx2.shape == x2.shape and dx2.dtype == x2.dtype
    assert jnp.allclose(dx2.astype(jnp.float32),
                        jnp.full((3, 5, 7), -3.0, dtype=jnp.float32))

    print("KERNEL_OK")
</pallas_src>

<mosaic_0001>
module attributes {stable_mosaic.version = 11 : i64} {
  func.func @_neg_scale_kernel(%arg0: i32, %arg1: memref<16x128xf32, #tpu.memory_space<vmem>>, %arg2: memref<16x128xf32, #tpu.memory_space<vmem>>) attributes {dimension_semantics = [#tpu.dimension_semantics<parallel>], iteration_bounds = array<i64: 1>, scalar_prefetch = 0 : i64, scratch_operands = 0 : i64, tpu.core_type = #tpu.core_type<tc>, window_params = [{transform_indices = @transform_0, window_bounds = array<i64: 16, 128>}, {transform_indices = @transform_1, window_bounds = array<i64: 16, 128>}]} {
    %c0 = arith.constant 0 : index
    %c0_0 = arith.constant 0 : index
    %0 = vector.load %arg1[%c0, %c0_0] : memref<16x128xf32, #tpu.memory_space<vmem>>, vector<16x128xf32>
    %cst = arith.constant -1.000000e+00 : f32
    %1 = vector.broadcast %cst : f32 to vector<16x128xf32>
    %2 = arith.mulf %0, %1 : vector<16x128xf32>
    %c0_1 = arith.constant 0 : index
    %c0_2 = arith.constant 0 : index
    %3 = vector.load %arg2[%c0_1, %c0_2] : memref<16x128xf32, #tpu.memory_space<vmem>>, vector<16x128xf32>
    tpu.vector_store %arg2[%c0_1, %c0_2], %2 {strides = array<i32>} : memref<16x128xf32, #tpu.memory_space<vmem>>, vector<16x128xf32>,
    return
  }
  func.func @transform_0(%arg0: i32) -> (i32, i32) {
    %c0_i32 = arith.constant 0 : i32
    %c0_i32_0 = arith.constant 0 : i32
    return %arg0, %c0_i32 : i32, i32
  }
  func.func @transform_1(%arg0: i32) -> (i32, i32) {
    %c0_i32 = arith.constant 0 : i32
    %c0_i32_0 = arith.constant 0 : i32
    return %arg0, %c0_i32 : i32, i32
  }
}

</mosaic_0001>

<llo_original>
// kernel: tpu_custom_call.1
$region0: #{tpu_custom_call.1}
  #allocation0 [shape = 'u32[]', space=smem, size = 0x4, offset = 0x4, fixed_abs, tag = 'smem constant byte address 0x4 - core index']
  #allocation1 [shape = 'u32[144,128]{1,0:T(1,128)}', space=vmem, size = 0x12000, scoped, tag = 'internal scratch']
  %s0 = inlined_call_operand.hbm [shape: f32[16,128], index: 0, kind: input, shape index: {}]
  %s1 = inlined_call_operand.hbm [shape: f32[16,128], index: 1, kind: output, shape index: {}]
  %s2 = sld [smem:[#allocation0]]
  $region18: #{tpu_custom_call.1} parent=0
    _
  %s4 = ssub.s32 1, %s2
  %s5 = scalar_select 0, %s4, %s2
  $region1: #{tpu_custom_call.1} parent=0
    #allocation2 [shape = 'u8[8192]{0}', space=vmem, size = 0x2000, scoped, tag = 'input window, operand 0, single buffered']
    #allocation3 [shape = 's32[1]{0}', space=sflag, size = 0x4, scoped, tag = 'scoped memory for tpu_custom_call.1']
    #allocation4 [shape = 's32[1]{0}', space=sflag, size = 0x4, scoped, tag = 'scoped memory for tpu_custom_call.1']
    #allocation5 [shape = 'u8[8192]{0}', space=vmem, size = 0x2000, scoped, tag = 'output window, operand 0, single buffered']
    %6 = vsyncpa [#allocation3], 0
    %7 = vsyncpa [#allocation4], 0
    // Predicated region
    $region2: #{tpu_custom_call.1} parent=1 // pred_check
      _
    $region3: #{tpu_custom_call.1} parent=1 // pred_check_branch
      %9 = sbr.rel (0) target = $region5
    $region4: #{tpu_custom_call.1} parent=1 // pred_region
      %s11 = ssub.s32 256, 256
      %12 = vsyncadd [#allocation3], %s11
      %s13 = sshll.u32 [#allocation2], 4
      %s14 = int_to_ptr.vmem [resolvable:$true] %s13
      %19 = dma.hbm_to_vmem [thread:$0]  %s0, 256, %s14, [#allocation3], 128, 128, 8
    $region5: #{tpu_custom_call.1} parent=1 // pred_fallthru
      _
    // Predicated region
    $region6: #{tpu_custom_call.1} parent=1 // pred_check
      _
    $region7: #{tpu_custom_call.1} parent=1 // pred_check_branch
      %21 = sbr.rel (0) target = $region9
    $region8: #{tpu_custom_call.1} parent=1 // pred_region
      %22 = dma.done [#allocation3], 256
    $region9: #{tpu_custom_call.1} parent=1 // pred_fallthru
      _
    %v23 = vld [vmem:[#allocation2] sm:$0xff]
    %v24 = vld [vmem:[#allocation2 + $0x8] sm:$0xff]
    %v25 = vmul.f32 %v23, -1.0
    %v26 = vmul.f32 %v24, -1.0
    %27 = vst [vmem:[#allocation5] sm:$0xff] %v25
    %28 = vst [vmem:[#allocation5 + $0x8] sm:$0xff] %v26
    // Predicated region
    $region10: #{tpu_custom_call.1} parent=1 // pred_check
      _
    $region11: #{tpu_custom_call.1} parent=1 // pred_check_branch
      %30 = sbr.rel (0) target = $region13
    $region12: #{tpu_custom_call.1} parent=1 // pred_region
      %s32 = ssub.s32 256, 256
      %33 = vsyncadd [#allocation4], %s32
      %s34 = sshll.u32 [#allocation5], 4
      %s35 = int_to_ptr.vmem [resolvable:$true] %s34
      %40 = dma.vmem_to_hbm [thread:$0]  %s35, 256, %s1, [#allocation4], 128, 128, 8
    $region13: #{tpu_custom_call.1} parent=1 // pred_fallthru
      _
    // Predicated region
    $region14: #{tpu_custom_call.1} parent=1 // pred_check
      _
    $region15: #{tpu_custom_call.1} parent=1 // pred_check_branch
      %42 = sbr.rel (0) target = $region17
    $region16: #{tpu_custom_call.1} parent=1 // pred_region
      %43 = dma.done [#allocation4], 256
    $region17: #{tpu_custom_call.1} parent=1 // pred_fallthru
      _
    %44 = vsyncpa [#allocation3], 1
    %45 = vsyncpa [#allocation4], 1

</llo_original>
